<compile_context>
chip_gen: v7x
topology: tpu7x:2x2x1
jax: 0.10.0
libtpu: 0.0.40
codegen_flags: <defaults>
</compile_context>

<pallas_src>
import jax
import jax.numpy as jnp
from jax.experimental import pallas as pl
from jax.experimental.pallas import tpu as pltpu


def _ff_kernel(x_ref, w1_ref, b1_ref, w2_ref, b2_ref, o_ref):
    # x_ref:  (1, C_in, TN)   one batch element, one N-tile (N on lanes)
    # w1_ref: (H, C_in), b1_ref: (H, 1)
    # w2_ref: (C_out, H), b2_ref: (C_out, 1)
    # o_ref:  (1, C_out, TN)
    x = x_ref[0]  # (C_in, TN)

    # fc1: (H, C_in) @ (C_in, TN) -> (H, TN), full-f32 MXU passes (free slack).
    h = jnp.dot(
        w1_ref[...], x,
        preferred_element_type=jnp.float32,
        precision=jax.lax.Precision.HIGHEST,
    )
    h = h + b1_ref[...]  # (H, 1) broadcasts across lanes

    # Exact GELU (matches torch.nn.functional.gelu default, erf-based).
    inv_sqrt2 = jnp.float32(0.7071067811865476)
    h = 0.5 * h * (1.0 + jax.lax.erf(h * inv_sqrt2))

    # fc2: (C_out, H) @ (H, TN) -> (C_out, TN).
    y = jnp.dot(
        w2_ref[...], h,
        preferred_element_type=jnp.float32,
        precision=jax.lax.Precision.HIGHEST,
    )
    y = y + b2_ref[...]  # (C_out, 1) broadcasts across lanes

    o_ref[0] = y.astype(o_ref.dtype)


def _pick_tile_n(n_padded, batch, max_tile=8192):
    """Largest 128-multiple tile <= max_tile dividing the padded N, but keep
    enough grid steps (>= 4 when possible) for 2-TC load balance on v7x."""
    tn = 128
    while tn * 2 <= max_tile and n_padded % (tn * 2) == 0:
        tn *= 2
    while tn > 128 and batch * (n_padded // tn) < 4 and n_padded % (tn // 2) == 0:
        tn //= 2
    return tn


@jax.jit
def feedforward_aggre(x_ncw, w1, b1, w2, b2):
    """x_ncw: (B, C_in, N) float32 -> (B, C_out, N) float32.

    w1: (H, C_in), b1: (H, 1), w2: (C_out, H), b2: (C_out, 1)
    (PyTorch Linear weight layout, biases as column vectors).
    """
    B, C_in, N = x_ncw.shape
    H = w1.shape[0]
    C_out = w2.shape[0]

    # Pad N up to a multiple of 128 so stores are lane-dense (unmasked vst).
    Np = ((N + 127) // 128) * 128
    x_pad = x_ncw if Np == N else jnp.pad(x_ncw, ((0, 0), (0, 0), (0, Np - N)))

    TN = _pick_tile_n(Np, B)
    grid = (B, Np // TN)

    out_pad = pl.pallas_call(
        _ff_kernel,
        out_shape=jax.ShapeDtypeStruct((B, C_out, Np), x_ncw.dtype),
        grid_spec=pltpu.PrefetchScalarGridSpec(
            num_scalar_prefetch=0,
            grid=grid,
            in_specs=[
                pl.BlockSpec((1, C_in, TN), lambda b, n: (b, 0, n)),
                pl.BlockSpec((H, C_in), lambda b, n: (0, 0)),
                pl.BlockSpec((H, 1), lambda b, n: (0, 0)),
                pl.BlockSpec((C_out, H), lambda b, n: (0, 0)),
                pl.BlockSpec((C_out, 1), lambda b, n: (0, 0)),
            ],
            out_specs=pl.BlockSpec((1, C_out, TN), lambda b, n: (b, 0, n)),
        ),
        compiler_params=pltpu.CompilerParams(
            dimension_semantics=("parallel", "parallel"),
            vmem_limit_bytes=32 * 1024 * 1024,
        ),
    )(x_pad, w1, b1, w2, b2)

    return out_pad if Np == N else out_pad[:, :, :N]


def _reference(x_ncw, w1, b1, w2, b2):
    """Plain-JAX reference mirroring the PyTorch forward (f32 matmuls)."""
    x = jnp.transpose(x_ncw, (0, 2, 1))  # (B, N, C_in)
    h = jnp.einsum("bnc,hc->bnh", x, w1,
                   precision=jax.lax.Precision.HIGHEST) + b1[:, 0]
    h = 0.5 * h * (1.0 + jax.lax.erf(h * jnp.float32(0.7071067811865476)))
    y = jnp.einsum("bnh,oh->bno", h, w2,
                   precision=jax.lax.Precision.HIGHEST) + b2[:, 0]
    return jnp.transpose(y, (0, 2, 1))  # (B, C_out, N)


if __name__ == "__main__":
    # Module hyperparameters (small, consistent with Feedforward_aggre).
    channel = 4
    hidden = 32
    C_in = channel * 2            # fc1 in_features = channel * 2 = 8
    B, N = 2, 16                  # batch, sequence length (non-128 N exercises padding)

    key = jax.random.PRNGKey(0)
    k_x, k_w1, k_b1, k_w2, k_b2 = jax.random.split(key, 5)

    x = jax.random.normal(k_x, (B, C_in, N), dtype=jnp.float32)

    # PyTorch Linear stores W as (out, in); the kernel consumes that layout
    # directly (h = W1 @ x_cols).  Biases are column vectors (out, 1).
    w1 = jax.random.normal(k_w1, (hidden, C_in), dtype=jnp.float32) * 0.1
    b1 = jax.random.normal(k_b1, (hidden, 1), dtype=jnp.float32) * 0.1
    w2 = jax.random.normal(k_w2, (channel, hidden), dtype=jnp.float32) * 0.1
    b2 = jax.random.normal(k_b2, (channel, 1), dtype=jnp.float32) * 0.1

    out = feedforward_aggre(x, w1, b1, w2, b2)
    out = jax.block_until_ready(out)

    ref = _reference(x, w1, b1, w2, b2)
    assert out.shape == (B, channel, N), out.shape
    assert jnp.allclose(out, ref, atol=1e-5, rtol=1e-5), "mismatch vs reference"

    print("KERNEL_OK")
</pallas_src>

<mosaic_0001>
module attributes {stable_mosaic.version = 11 : i64} {
  func.func @_ff_kernel(%arg0: i32, %arg1: i32, %arg2: memref<1x8x128xf32, #tpu.memory_space<vmem>>, %arg3: memref<32x8xf32, #tpu.memory_space<vmem>>, %arg4: memref<32x1xf32, #tpu.memory_space<vmem>>, %arg5: memref<4x32xf32, #tpu.memory_space<vmem>>, %arg6: memref<4x1xf32, #tpu.memory_space<vmem>>, %arg7: memref<1x4x128xf32, #tpu.memory_space<vmem>>) attributes {dimension_semantics = [#tpu.dimension_semantics<parallel>, #tpu.dimension_semantics<parallel>], iteration_bounds = array<i64: 2, 1>, scalar_prefetch = 0 : i64, scratch_operands = 0 : i64, tpu.core_type = #tpu.core_type<tc>, window_params = [{transform_indices = @transform_0, window_bounds = array<i64: 1, 8, 128>}, {pipeline_mode = #tpu.pipeline_mode<synchronous>, transform_indices = @transform_1, window_bounds = array<i64: 32, 8>}, {pipeline_mode = #tpu.pipeline_mode<synchronous>, transform_indices = @transform_2, window_bounds = array<i64: 32, 1>}, {pipeline_mode = #tpu.pipeline_mode<synchronous>, transform_indices = @transform_3, window_bounds = array<i64: 4, 32>}, {pipeline_mode = #tpu.pipeline_mode<synchronous>, transform_indices = @transform_4, window_bounds = array<i64: 4, 1>}, {transform_indices = @transform_5, window_bounds = array<i64: 1, 4, 128>}]} {
    %c0 = arith.constant 0 : index
    %c0_0 = arith.constant 0 : index
    %c0_1 = arith.constant 0 : index
    %0 = vector.load %arg2[%c0, %c0_0, %c0_1] : memref<1x8x128xf32, #tpu.memory_space<vmem>>, vector<1x8x128xf32>
    %1 = vector.shape_cast %0 : vector<1x8x128xf32> to vector<8x128xf32>
    %c0_2 = arith.constant 0 : index
    %c0_3 = arith.constant 0 : index
    %2 = vector.load %arg3[%c0_2, %c0_3] : memref<32x8xf32, #tpu.memory_space<vmem>>, vector<32x8xf32>
    %cst = arith.constant dense<0.000000e+00> : vector<32x128xf32>
    %3 = tpu.matmul %2, %1, %cst {dimension_numbers = #tpu.dot_dimension_numbers<[1], [0], [0], [1], [0, 0, 1, 1], [], []>, precision = #tpu.contract_precision<fp32>} : vector<32x8xf32>, vector<8x128xf32>, vector<32x128xf32> -> vector<32x128xf32>
    %c0_4 = arith.constant 0 : index
    %c0_5 = arith.constant 0 : index
    %4 = vector.load %arg4[%c0_4, %c0_5] : memref<32x1xf32, #tpu.memory_space<vmem>>, vector<32x1xf32>
    %5 = vector.broadcast %4 : vector<32x1xf32> to vector<32x128xf32>
    %6 = arith.addf %3, %5 : vector<32x128xf32>
    %cst_6 = arith.constant 5.000000e-01 : f32
    %7 = vector.broadcast %cst_6 : f32 to vector<32x128xf32>
    %8 = arith.mulf %7, %6 : vector<32x128xf32>
    %cst_7 = arith.constant 0.707106769 : f32
    %9 = vector.broadcast %cst_7 : f32 to vector<32x128xf32>
    %10 = arith.mulf %6, %9 : vector<32x128xf32>
    %11 = math.erf %10 : vector<32x128xf32>
    %cst_8 = arith.constant 1.000000e+00 : f32
    %12 = vector.broadcast %cst_8 : f32 to vector<32x128xf32>
    %13 = arith.addf %12, %11 : vector<32x128xf32>
    %14 = arith.mulf %8, %13 : vector<32x128xf32>
    %c0_9 = arith.constant 0 : index
    %c0_10 = arith.constant 0 : index
    %15 = vector.load %arg5[%c0_9, %c0_10] : memref<4x32xf32, #tpu.memory_space<vmem>>, vector<4x32xf32>
    %cst_11 = arith.constant dense<0.000000e+00> : vector<4x128xf32>
    %16 = tpu.matmul %15, %14, %cst_11 {dimension_numbers = #tpu.dot_dimension_numbers<[1], [0], [0], [1], [0, 0, 1, 1], [], []>, precision = #tpu.contract_precision<fp32>} : vector<4x32xf32>, vector<32x128xf32>, vector<4x128xf32> -> vector<4x128xf32>
    %c0_12 = arith.constant 0 : index
    %c0_13 = arith.constant 0 : index
    %17 = vector.load %arg6[%c0_12, %c0_13] : memref<4x1xf32, #tpu.memory_space<vmem>>, vector<4x1xf32>
    %18 = vector.broadcast %17 : vector<4x1xf32> to vector<4x128xf32>
    %19 = arith.addf %16, %18 : vector<4x128xf32>
    %c0_14 = arith.constant 0 : index
    %c0_15 = arith.constant 0 : index
    %c0_16 = arith.constant 0 : index
    %20 = vector.load %arg7[%c0_14, %c0_15, %c0_16] : memref<1x4x128xf32, #tpu.memory_space<vmem>>, vector<1x4x128xf32>
    %21 = vector.shape_cast %20 : vector<1x4x128xf32> to vector<4x128xf32>
    %22 = vector.shape_cast %19 : vector<4x128xf32> to vector<1x4x128xf32>
    tpu.vector_store %arg7[%c0_14, %c0_15, %c0_16], %22 {strides = array<i32>} : memref<1x4x128xf32, #tpu.memory_space<vmem>>, vector<1x4x128xf32>,
    return
  }
  func.func @transform_0(%arg0: i32, %arg1: i32) -> (i32, i32, i32) {
    %c0_i32 = arith.constant 0 : i32
    %c0_i32_0 = arith.constant 0 : i32
    return %arg0, %c0_i32, %arg1 : i32, i32, i32
  }
  func.func @transform_1(%arg0: i32, %arg1: i32) -> (i32, i32) {
    %c0_i32 = arith.constant 0 : i32
    %c0_i32_0 = arith.constant 0 : i32
    %c0_i32_1 = arith.constant 0 : i32
    return %c0_i32, %c0_i32_0 : i32, i32
  }
  func.func @transform_2(%arg0: i32, %arg1: i32) -> (i32, i32) {
    %c0_i32 = arith.constant 0 : i32
    %c0_i32_0 = arith.constant 0 : i32
    %c0_i32_1 = arith.constant 0 : i32
    return %c0_i32, %c0_i32_0 : i32, i32
  }
  func.func @transform_3(%arg0: i32, %arg1: i32) -> (i32, i32) {
    %c0_i32 = arith.constant 0 : i32
    %c0_i32_0 = arith.constant 0 : i32
    %c0_i32_1 = arith.constant 0 : i32
    return %c0_i32, %c0_i32_0 : i32, i32
  }
  func.func @transform_4(%arg0: i32, %arg1: i32) -> (i32, i32) {
    %c0_i32 = arith.constant 0 : i32
    %c0_i32_0 = arith.constant 0 : i32
    %c0_i32_1 = arith.constant 0 : i32
    return %c0_i32, %c0_i32_0 : i32, i32
  }
  func.func @transform_5(%arg0: i32, %arg1: i32) -> (i32, i32, i32) {
    %c0_i32 = arith.constant 0 : i32
    %c0_i32_0 = arith.constant 0 : i32
    return %arg0, %c0_i32, %arg1 : i32, i32, i32
  }
}

</mosaic_0001>

<llo_original>
// kernel: feedforward_aggre.1
$region0: #{feedforward_aggre.1}
  #allocation0 [shape = 'u32[]', space=smem, size = 0x4, offset = 0x4, fixed_abs, tag = 'smem constant byte address 0x4 - core index']
  #allocation1 [shape = 'u32[144,128]{1,0:T(1,128)}', space=vmem, size = 0x12000, scoped, tag = 'internal scratch']
  %s0 = inlined_call_operand.vmem [shape: f32[2,8,128], index: 0, kind: input, shape index: {}]
  %s1 = inlined_call_operand.vmem [shape: f32[32,8], index: 1, kind: input, shape index: {}]
  %s2 = inlined_call_operand.vmem [shape: f32[32,1], index: 2, kind: input, shape index: {}]
  %s3 = inlined_call_operand.vmem [shape: f32[4,32], index: 3, kind: input, shape index: {}]
  %s4 = inlined_call_operand.vmem [shape: f32[4,1], index: 4, kind: input, shape index: {}]
  %s5 = inlined_call_operand.hbm [shape: f32[2,4,128], index: 5, kind: output, shape index: {}]
  %s6 = sld [smem:[#allocation0]]
  $region53: #{feedforward_aggre.1} parent=0
    _
  %s8 = ssub.s32 1, %s6
  %s9 = scalar_select 0, %s8, %s6
  $region1: #{feedforward_aggre.1} parent=0
    #allocation2 [shape = 'u8[4096]{0}', space=vmem, size = 0x1000, scoped, tag = 'output window, operand 0']
    #allocation3 [shape = 's32[2]{0}', space=sflag, size = 0x8, scoped, tag = 'scoped memory for feedforward_aggre.1']
    %10 = vsyncpa [#allocation3], 0
    %s11 = scalar_lea.sflag [#allocation3], 1
    %12 = vsyncpa %s11, 0
    loop: start=0, step=1, limit=4
    $region2: #{feedforward_aggre.1} parent=1 // loop_pre_header
      _
    $region3: #{feedforward_aggre.1} parent=1 // loop_header
      %s14 = sphi 0, %s18
      %p15 = scmp.ge.s32.totalorder %s14, 4
      %s21 = sphi 0, %s33
      %s22 = sphi 0, %s29
      %s23 = sphi 0, %s21
      %s24 = sphi 0, %s22
      %s25 = sphi 0, %s23
      %s26 = sphi 0, %s24
      %s38 = sphi 0, %s40
      %s41 = sphi 0, %s38
      %s42 = sphi 0, %s41
      %s58 = sphi 0, %s42
      %s62 = sphi 0, %s62
      %s64 = sphi 0, %s62
      %s65 = sphi 0, %s64
      %s79 = sphi 0, %s65
      %s83 = sphi 0, %s83
      %s85 = sphi 0, %s83
      %s86 = sphi 0, %s85
      %s100 = sphi 0, %s86
      %s104 = sphi 0, %s104
      %s106 = sphi 0, %s104
      %s107 = sphi 0, %s106
      %s121 = sphi 0, %s107
      %s125 = sphi 0, %s125
      %s127 = sphi 0, %s125
      %s128 = sphi 0, %s127
      %s142 = sphi 0, %s128
      %s150 = sphi 0, %s152
      %s153 = sphi 0, %s150
      %s154 = sphi 0, %s153
      %s170 = sphi 0, %s154
    $region4: #{feedforward_aggre.1} parent=1 // loop_header_branch
      %17 = sbr.rel (%p15) target = $region8
    $region5: #{feedforward_aggre.1} parent=1 // loop_body
      %s19 = ssub.s32 %s14, 1
      %s20 = ssub.s32 %s14, 2
      %s27 = sadd.s32 1, %s22
      %p28 = scmp.ge.s32.totalorder %s27, 1
      %s29 = scalar_select %p28, 0, %s27
      %s30 = sadd.s32 1, %s21
      %s31 = scalar_select %p28, %s30, %s21
      %p32 = scmp.ge.s32.totalorder %s31, 2
      %s33 = scalar_select %p32, 0, %s31
      %s34 = ssub.s32 %s21, %s33
      %s35 = ssub.s32 %s22, %s29
      %s36 = sor.u32 %s34, %s35
      %p37 = scmp.eq.s32.totalorder %s36, 0
      %s39 = sadd.s32 %s38, 1
      %s40 = scalar_select %p37, %s38, %s39
      %p43 = pneg %p37
      %p44 = scmp.eq.s32.totalorder %s14, 1
      %p45 = por %p43, %p44
      %p46 = scmp.ne.s32.totalorder %s38, %s41
      %p47 = scmp.eq.s32.totalorder %s14, 0
      %p48 = por %p46, %p47
      %p49 = scmp.ne.s32.totalorder %s38, %s41
      %p50 = scmp.eq.s32.totalorder %s19, 1
      %p51 = por %p49, %p50
      %p52 = scmp.ne.s32.totalorder %s41, %s42
      %p53 = scmp.eq.s32.totalorder %s19, 0
      %p54 = por %p52, %p53
      %p55 = scmp.ne.s32.totalorder %s41, %s42
      %p56 = scmp.eq.s32.totalorder %s20, 1
      %p57 = por %p55, %p56
      %p59 = scmp.ne.s32.totalorder %s42, %s58
      %p60 = scmp.eq.s32.totalorder %s20, 0
      %p61 = por %p59, %p60
      %s63 = sadd.s32 %s62, 1
      %p66 = scmp.eq.s32.totalorder %s14, 1
      %p67 = scmp.ne.s32.totalorder %s62, %s64
      %p68 = scmp.eq.s32.totalorder %s14, 0
      %p69 = por %p67, %p68
      %p70 = scmp.ne.s32.totalorder %s62, %s64
      %p71 = scmp.eq.s32.totalorder %s19, 1
      %p72 = por %p70, %p71
      %p73 = scmp.ne.s32.totalorder %s64, %s65
      %p74 = scmp.eq.s32.totalorder %s19, 0
      %p75 = por %p73, %p74
      %p76 = scmp.ne.s32.totalorder %s64, %s65
      %p77 = scmp.eq.s32.totalorder %s20, 1
      %p78 = por %p76, %p77
      %p80 = scmp.ne.s32.totalorder %s65, %s79
      %p81 = scmp.eq.s32.totalorder %s20, 0
      %p82 = por %p80, %p81
      %s84 = sadd.s32 %s83, 1
      %p87 = scmp.eq.s32.totalorder %s14, 1
      %p88 = scmp.ne.s32.totalorder %s83, %s85
      %p89 = scmp.eq.s32.totalorder %s14, 0
      %p90 = por %p88, %p89
      %p91 = scmp.ne.s32.totalorder %s83, %s85
      %p92 = scmp.eq.s32.totalorder %s19, 1
      %p93 = por %p91, %p92
      %p94 = scmp.ne.s32.totalorder %s85, %s86
      %p95 = scmp.eq.s32.totalorder %s19, 0
      %p96 = por %p94, %p95
      %p97 = scmp.ne.s32.totalorder %s85, %s86
      %p98 = scmp.eq.s32.totalorder %s20, 1
      %p99 = por %p97, %p98
      %p101 = scmp.ne.s32.totalorder %s86, %s100
      %p102 = scmp.eq.s32.totalorder %s20, 0
      %p103 = por %p101, %p102
      %s105 = sadd.s32 %s104, 1
      %p108 = scmp.eq.s32.totalorder %s14, 1
      %p109 = scmp.ne.s32.totalorder %s104, %s106
      %p110 = scmp.eq.s32.totalorder %s14, 0
      %p111 = por %p109, %p110
      %p112 = scmp.ne.s32.totalorder %s104, %s106
      %p113 = scmp.eq.s32.totalorder %s19, 1
      %p114 = por %p112, %p113
      %p115 = scmp.ne.s32.totalorder %s106, %s107
      %p116 = scmp.eq.s32.totalorder %s19, 0
      %p117 = por %p115, %p116
      %p118 = scmp.ne.s32.totalorder %s106, %s107
      %p119 = scmp.eq.s32.totalorder %s20, 1
      %p120 = por %p118, %p119
      %p122 = scmp.ne.s32.totalorder %s107, %s121
      %p123 = scmp.eq.s32.totalorder %s20, 0
      %p124 = por %p122, %p123
      %s126 = sadd.s32 %s125, 1
      %p129 = scmp.eq.s32.totalorder %s14, 1
      %p130 = scmp.ne.s32.totalorder %s125, %s127
      %p131 = scmp.eq.s32.totalorder %s14, 0
      %p132 = por %p130, %p131
      %p133 = scmp.ne.s32.totalorder %s125, %s127
      %p134 = scmp.eq.s32.totalorder %s19, 1
      %p135 = por %p133, %p134
      %p136 = scmp.ne.s32.totalorder %s127, %s128
      %p137 = scmp.eq.s32.totalorder %s19, 0
      %p138 = por %p136, %p137
      %p139 = scmp.ne.s32.totalorder %s127, %s128
      %p140 = scmp.eq.s32.totalorder %s20, 1
      %p141 = por %p139, %p140
      %p143 = scmp.ne.s32.totalorder %s128, %s142
      %p144 = scmp.eq.s32.totalorder %s20, 0
      %p145 = por %p143, %p144
      %s146 = ssub.s32 %s21, %s33
      %s147 = ssub.s32 %s22, %s29
      %s148 = sor.u32 %s146, %s147
      %p149 = scmp.eq.s32.totalorder %s148, 0
      %s151 = sadd.s32 %s150, 1
      %s152 = scalar_select %p149, %s150, %s151
      %p155 = pneg %p149
      %p156 = scmp.eq.s32.totalorder %s14, 1
      %p157 = por %p155, %p156
      %p158 = scmp.ne.s32.totalorder %s150, %s153
      %p159 = scmp.eq.s32.totalorder %s14, 0
      %p160 = por %p158, %p159
      %p161 = scmp.ne.s32.totalorder %s150, %s153
      %p162 = scmp.eq.s32.totalorder %s19, 1
      %p163 = por %p161, %p162
      %p164 = scmp.ne.s32.totalorder %s153, %s154
      %p165 = scmp.eq.s32.totalorder %s19, 0
      %p166 = por %p164, %p165
      %p167 = scmp.ne.s32.totalorder %s153, %s154
      %p168 = scmp.eq.s32.totalorder %s20, 1
      %p169 = por %p167, %p168
      %p171 = scmp.ne.s32.totalorder %s154, %s170
      %p172 = scmp.eq.s32.totalorder %s20, 0
      %p173 = por %p171, %p172
      %p174 = scmp.le.s32.totalorder 1, %s14
      %p175 = scmp.lt.s32.totalorder %s14, 3
      %p176 = pnand %p174, %p175
      %p177 = pneg %p176
      // Predicated region
      $region9: #{feedforward_aggre.1} parent=5 // pred_check
        _
      $region10: #{feedforward_aggre.1} parent=5 // pred_check_branch
        %179 = sbr.rel (%p176) target = $region12
      $region11: #{feedforward_aggre.1} parent=5 // pred_region
        %s180 = ssub.s32 %s14, 1
        // Predicated region
        $region13: #{feedforward_aggre.1} parent=11 // pred_check
          %p181 = pneg %p75
        $region14: #{feedforward_aggre.1} parent=11 // pred_check_branch
          %183 = sbr.rel (%p181) target = $region16
        $region15: #{feedforward_aggre.1} parent=11 // pred_region
          _
        $region16: #{feedforward_aggre.1} parent=11 // pred_fallthru
          _
        // Predicated region
        $region17: #{feedforward_aggre.1} parent=11 // pred_check
          %p184 = pneg %p96
        $region18: #{feedforward_aggre.1} parent=11 // pred_check_branch
          %186 = sbr.rel (%p184) target = $region20
        $region19: #{feedforward_aggre.1} parent=11 // pred_region
          _
        $region20: #{feedforward_aggre.1} parent=11 // pred_fallthru
          _
        // Predicated region
        $region21: #{feedforward_aggre.1} parent=11 // pred_check
          %p187 = pneg %p117
        $region22: #{feedforward_aggre.1} parent=11 // pred_check_branch
          %189 = sbr.rel (%p187) target = $region24
        $region23: #{feedforward_aggre.1} parent=11 // pred_region
          _
        $region24: #{feedforward_aggre.1} parent=11 // pred_fallthru
          _
        // Predicated region
        $region25: #{feedforward_aggre.1} parent=11 // pred_check
          %p190 = pneg %p138
        $region26: #{feedforward_aggre.1} parent=11 // pred_check_branch
          %192 = sbr.rel (%p190) target = $region28
        $region27: #{feedforward_aggre.1} parent=11 // pred_region
          _
        $region28: #{feedforward_aggre.1} parent=11 // pred_fallthru
          _
      $region12: #{feedforward_aggre.1} parent=5 // pred_fallthru
        _
      %p193 = scmp.lt.s32.totalorder %s14, 2
      // Predicated region
      $region29: #{feedforward_aggre.1} parent=5 // pred_check
        %p194 = pneg %p193
      $region30: #{feedforward_aggre.1} parent=5 // pred_check_branch
        %196 = sbr.rel (%p194) target = $region32
      $region31: #{feedforward_aggre.1} parent=5 // pred_region
        // Predicated region
        $region33: #{feedforward_aggre.1} parent=31 // pred_check
          %p197 = pneg %p48
        $region34: #{feedforward_aggre.1} parent=31 // pred_check_branch
          %199 = sbr.rel (%p197) target = $region36
        $region35: #{feedforward_aggre.1} parent=31 // pred_region
          %p200 = scmp.lt.s32.totalorder %s21, 1
          %s201 = scalar_select %p200, %s21, 1
          %p202 = scmp.lt.s32.totalorder %s22, 0
          %s203 = scalar_select %p202, %s22, 0
          %s204 = sadd.s32 %s203, %s201
          %s205 = smul.addr %s204, 8
          %s206 = scalar_lea.vmem %s0, %s205
        $region36: #{feedforward_aggre.1} parent=31 // pred_fallthru
          _
      $region32: #{feedforward_aggre.1} parent=5 // pred_fallthru
        _
      %p207 = scmp.le.s32.totalorder 1, %s14
      %p208 = scmp.lt.s32.totalorder %s14, 3
      %p209 = pnand %p207, %p208
      %p210 = pneg %p209
      // Predicated region
      $region37: #{feedforward_aggre.1} parent=5 // pred_check
        _
      $region38: #{feedforward_aggre.1} parent=5 // pred_check_branch
        %212 = sbr.rel (%p209) target = $region40
      $region39: #{feedforward_aggre.1} parent=5 // pred_region
        %s213 = ssub.s32 %s14, 1
        %p214 = scmp.lt.s32.totalorder %s23, 1
        %s215 = scalar_select %p214, %s23, 1
        %p216 = scmp.lt.s32.totalorder %s24, 0
        %s217 = scalar_select %p216, %s24, 0
        %s218 = sadd.s32 %s217, %s215
        %s219 = smul.addr %s218, 8
        %s220 = scalar_lea.vmem %s0, %s219
        %p221 = pneg %p54
        %p222 = pneg %p51
        %p223 = pneg %p75
        %p224 = pneg %p72
        %p225 = pneg %p96
        %p226 = pneg %p93
        %p227 = pneg %p117
        %p228 = pneg %p114
        %p229 = pneg %p138
        %p230 = pneg %p135
        %p231 = pneg %p166
        %p232 = pneg %p163
        %s233 = sand.u32 %s153, 1
        %s234 = scalar_lea.sflag [#allocation3], %s233
        %s235 = sand.u32 %s153, 1
        %s236 = smul.addr %s235, 4
        %s237 = scalar_lea.vmem [#allocation2], %s236
        %p238 = scmp.lt.s32.totalorder %s23, 1
        %s239 = scalar_select %p238, %s23, 1
        %p240 = scmp.lt.s32.totalorder %s24, 0
        %s241 = scalar_select %p240, %s24, 0
        %s242 = sadd.s32 %s241, %s239
        %s243 = smul.addr %s242, 8
        %s244 = scalar_lea.vmem %s0, %s243
        %v245 = vld [vmem:[%s244] sm:$0xff]
        %v246 = vld [vmem:[%s1] sm:$0xff]
        %v247 = vld [vmem:[%s1 + $0x8] sm:$0xff]
        %v248 = vld [vmem:[%s1 + $0x10] sm:$0xff]
        %v249 = vld [vmem:[%s1 + $0x18] sm:$0xff]
        %v250 = vld [vmem:[%s2] sm:$0xff]
        %v251 = vld [vmem:[%s2 + $0x8] sm:$0xff]
        %v252 = vld [vmem:[%s2 + $0x10] sm:$0xff]
        %v253 = vld [vmem:[%s2 + $0x18] sm:$0xff]
        %255 = vset.pattern.permute.xlu0 0
        %256 = vperm.xlu0 %255, %v250
        %v257 = vpop.permute.xlu0 %256
        %260 = vset.pattern.permute.xlu0 0
        %261 = vperm.xlu0 %260, %v251
        %v262 = vpop.permute.xlu0 %261
        %265 = vset.pattern.permute.xlu0 0
        %266 = vperm.xlu0 %265, %v252
        %v267 = vpop.permute.xlu0 %266
        %270 = vset.pattern.permute.xlu0 0
        %271 = vperm.xlu0 %270, %v253
        %v272 = vpop.permute.xlu0 %271
        %vm274 = vcmask 64512
        %v276 = vsel %vm274, %v246, 0
        %v279 = vsel %vm274, %v247, 0
        %v282 = vsel %vm274, %v248, 0
        %v285 = vsel %vm274, %v249, 0
        %287 = vmatprep.subr.mxu0 0.0
        %v288 = vand.u32 %v245, 4294901760
        %289 = vmatpush1.msra.mxu0 %v288
        %290 = vmatprep.subr.mxu0 0.0
        %291 = vmatpush1.msra.mxu0 0.0
        %292 = vmatprep.subr.mxu0 0.0
        %293 = vmatpush1.msra.mxu0 0.0
        %294 = vmatprep.subr.mxu0 0.0
        %295 = vmatpush1.msra.mxu0 0.0
        %296 = vmatprep.subr.mxu0 0.0
        %297 = vmatpush1.msra.mxu0 0.0
        %298 = vmatprep.subr.mxu0 0.0
        %299 = vmatpush1.msra.mxu0 0.0
        %300 = vmatprep.subr.mxu0 0.0
        %301 = vmatpush1.msra.mxu0 0.0
        %302 = vmatprep.subr.mxu0 0.0
        %303 = vmatpush1.msra.mxu0 0.0
        %304 = vmatprep.subr.mxu0 0.0
        %305 = vmatpush1.msra.mxu0 0.0
        %306 = vmatprep.subr.mxu0 0.0
        %307 = vmatpush1.msra.mxu0 0.0
        %308 = vmatprep.subr.mxu0 0.0
        %309 = vmatpush1.msra.mxu0 0.0
        %310 = vmatprep.subr.mxu0 0.0
        %311 = vmatpush1.msra.mxu0 0.0
        %312 = vmatprep.subr.mxu0 0.0
        %313 = vmatpush1.msra.mxu0 0.0
        %314 = vmatprep.subr.mxu0 0.0
        %315 = vmatpush1.msra.mxu0 0.0
        %316 = vmatprep.subr.mxu0 0.0
        %317 = vmatpush1.msra.mxu0 0.0
        %318 = vmatprep.subr.mxu0 0.0
        %319 = vmatpush1.msra.mxu0 0.0
        %320 = vmatprep.subr.mxu0 0.0
        %321 = vmatpush1.msra.mxu0 0.0
        %322 = vmatprep.subr.mxu0 0.0
        %323 = vmatpush1.msra.mxu0 0.0
        %324 = vmatprep.subr.mxu0 0.0
        %325 = vmatpush1.msra.mxu0 0.0
        %326 = vmatprep.subr.mxu0 0.0
        %327 = vmatpush1.msra.mxu0 0.0
        %328 = vmatprep.subr.mxu0 0.0
        %329 = vmatpush1.msra.mxu0 0.0
        %330 = vmatprep.subr.mxu0 0.0
        %331 = vmatpush1.msra.mxu0 0.0
        %332 = vmatprep.subr.mxu0 0.0
        %333 = vmatpush1.msra.mxu0 0.0
        %334 = vmatprep.subr.mxu0 0.0
        %335 = vmatpush1.msra.mxu0 0.0
        %336 = vmatprep.subr.mxu0 0.0
        %337 = vmatpush1.msra.mxu0 0.0
        %338 = vmatprep.subr.mxu0 0.0
        %339 = vmatpush1.msra.mxu0 0.0
        %340 = vmatprep.subr.mxu0 0.0
        %341 = vmatpush1.msra.mxu0 0.0
        %342 = vmatprep.subr.mxu0 0.0
        %343 = vmatpush1.msra.mxu0 0.0
        %344 = vmatprep.subr.mxu0 0.0
        %345 = vmatpush1.msra.mxu0 0.0
        %346 = vmatprep.subr.mxu0 0.0
        %347 = vmatpush1.msra.mxu0 0.0
        %348 = vmatprep.subr.mxu0 0.0
        %349 = vmatpush1.msra.mxu0 0.0
        %350 = vmatprep.subr.mxu0 0.0
        %351 = vmatpush1.msra.mxu0 0.0
        %352 = vmatprep.mubr.f32.mxu0 0.0
        %v353 = vand.u32 %v276, 4294901760
        %v354 = vsub.f32 %v276, %v353
        %v355 = vand.u32 %v354, 4294901760
        %v356 = vsub.f32 %v354, %v355
        %v357 = vand.u32 %v356, 4294901760
        %358 = vmatmul.mubr.f32.gmra.mrb[0].mxu0 %v357
        %v359 = vpop.f32.mrb[0].mxu0
        %v360 = vadd.f32 %v257, %v359
        %v361 = vpop.f32.mrb[0].mxu0
        %362 = vmatprep.mubr.f32.mxu0 0.0
        %v363 = vand.u32 %v279, 4294901760
        %v364 = vsub.f32 %v279, %v363
        %v365 = vand.u32 %v364, 4294901760
        %v366 = vsub.f32 %v364, %v365
        %v367 = vand.u32 %v366, 4294901760
        %368 = vmatmul.mubr.f32.gmra.mrb[0].mxu0 %v367
        %v369 = vpop.f32.mrb[0].mxu0
        %v370 = vadd.f32 %v262, %v369
        %v371 = vpop.f32.mrb[0].mxu0
        %372 = vmatprep.mubr.f32.mxu0 0.0
        %v373 = vand.u32 %v282, 4294901760
        %v374 = vsub.f32 %v282, %v373
        %v375 = vand.u32 %v374, 4294901760
        %v376 = vsub.f32 %v374, %v375
        %v377 = vand.u32 %v376, 4294901760
        %378 = vmatmul.mubr.f32.gmra.mrb[0].mxu0 %v377
        %v379 = vpop.f32.mrb[0].mxu0
        %v380 = vadd.f32 %v267, %v379
        %v381 = vpop.f32.mrb[0].mxu0
        %382 = vmatprep.mubr.f32.mxu0 0.0
        %v383 = vand.u32 %v285, 4294901760
        %v384 = vsub.f32 %v285, %v383
        %v385 = vand.u32 %v384, 4294901760
        %v386 = vsub.f32 %v384, %v385
        %v387 = vand.u32 %v386, 4294901760
        %388 = vmatmul.mubr.f32.gmra.mrb[0].mxu0 %v387
        %v389 = vpop.f32.mrb[0].mxu0
        %v390 = vadd.f32 %v272, %v389
        %v391 = vpop.f32.mrb[0].mxu0
        %392 = vdwg.mxu0
        %393 = vmatprep.subr.mxu0 0.0
        %v394 = vand.u32 %v245, 4294901760
        %v395 = vsub.f32 %v245, %v394
        %v396 = vand.u32 %v395, 4294901760
        %v397 = vsub.f32 %v395, %v396
        %v398 = vand.u32 %v397, 4294901760
        %399 = vmatpush1.msra.mxu0 %v398
        %400 = vmatprep.subr.mxu0 0.0
        %401 = vmatpush1.msra.mxu0 0.0
        %402 = vmatprep.subr.mxu0 0.0
        %403 = vmatpush1.msra.mxu0 0.0
        %404 = vmatprep.subr.mxu0 0.0
        %405 = vmatpush1.msra.mxu0 0.0
        %406 = vmatprep.subr.mxu0 0.0
        %407 = vmatpush1.msra.mxu0 0.0
        %408 = vmatprep.subr.mxu0 0.0
        %409 = vmatpush1.msra.mxu0 0.0
        %410 = vmatprep.subr.mxu0 0.0
        %411 = vmatpush1.msra.mxu0 0.0
        %412 = vmatprep.subr.mxu0 0.0
        %413 = vmatpush1.msra.mxu0 0.0
        %414 = vmatprep.subr.mxu0 0.0
        %415 = vmatpush1.msra.mxu0 0.0
        %416 = vmatprep.subr.mxu0 0.0
        %417 = vmatpush1.msra.mxu0 0.0
        %418 = vmatprep.subr.mxu0 0.0
        %419 = vmatpush1.msra.mxu0 0.0
        %420 = vmatprep.subr.mxu0 0.0
        %421 = vmatpush1.msra.mxu0 0.0
        %422 = vmatprep.subr.mxu0 0.0
        %423 = vmatpush1.msra.mxu0 0.0
        %424 = vmatprep.subr.mxu0 0.0
        %425 = vmatpush1.msra.mxu0 0.0
        %426 = vmatprep.subr.mxu0 0.0
        %427 = vmatpush1.msra.mxu0 0.0
        %428 = vmatprep.subr.mxu0 0.0
        %429 = vmatpush1.msra.mxu0 0.0
        %430 = vmatprep.subr.mxu0 0.0
        %431 = vmatpush1.msra.mxu0 0.0
        %432 = vmatprep.subr.mxu0 0.0
        %433 = vmatpush1.msra.mxu0 0.0
        %434 = vmatprep.subr.mxu0 0.0
        %435 = vmatpush1.msra.mxu0 0.0
        %436 = vmatprep.subr.mxu0 0.0
        %437 = vmatpush1.msra.mxu0 0.0
        %438 = vmatprep.subr.mxu0 0.0
        %439 = vmatpush1.msra.mxu0 0.0
        %440 = vmatprep.subr.mxu0 0.0
        %441 = vmatpush1.msra.mxu0 0.0
        %442 = vmatprep.subr.mxu0 0.0
        %443 = vmatpush1.msra.mxu0 0.0
        %444 = vmatprep.subr.mxu0 0.0
        %445 = vmatpush1.msra.mxu0 0.0
        %446 = vmatprep.subr.mxu0 0.0
        %447 = vmatpush1.msra.mxu0 0.0
        %448 = vmatprep.subr.mxu0 0.0
        %449 = vmatpush1.msra.mxu0 0.0
        %450 = vmatprep.subr.mxu0 0.0
        %451 = vmatpush1.msra.mxu0 0.0
        %452 = vmatprep.subr.mxu0 0.0
        %453 = vmatpush1.msra.mxu0 0.0
        %454 = vmatprep.subr.mxu0 0.0
        %455 = vmatpush1.msra.mxu0 0.0
        %456 = vmatprep.subr.mxu0 0.0
        %457 = vmatpush1.msra.mxu0 0.0
        %458 = vmatprep.subr.mxu0 0.0
        %459 = vmatpush1.msra.mxu0 0.0
        %460 = vmatprep.subr.mxu0 0.0
        %461 = vmatpush1.msra.mxu0 0.0
        %462 = vmatprep.mubr.f32.mxu0 0.0
        %v463 = vand.u32 %v276, 4294901760
        %464 = vmatmul.mubr.f32.gmra.mrb[0].mxu0 %v463
        %v465 = vpop.f32.mrb[0].mxu0
        %v466 = vadd.f32 %v360, %v465
        %v467 = vpop.f32.mrb[0].mxu0
        %468 = vmatprep.mubr.f32.mxu0 0.0
        %v469 = vand.u32 %v279, 4294901760
        %470 = vmatmul.mubr.f32.gmra.mrb[0].mxu0 %v469
        %v471 = vpop.f32.mrb[0].mxu0
        %v472 = vadd.f32 %v370, %v471
        %v473 = vpop.f32.mrb[0].mxu0
        %474 = vmatprep.mubr.f32.mxu0 0.0
        %v475 = vand.u32 %v282, 4294901760
        %476 = vmatmul.mubr.f32.gmra.mrb[0].mxu0 %v475
        %v477 = vpop.f32.mrb[0].mxu0
        %v478 = vadd.f32 %v380, %v477
        %v479 = vpop.f32.mrb[0].mxu0
        %480 = vmatprep.mubr.f32.mxu0 0.0
        %v481 = vand.u32 %v285, 4294901760
        %482 = vmatmul.mubr.f32.gmra.mrb[0].mxu0 %v481
        %v483 = vpop.f32.mrb[0].mxu0
        %v484 = vadd.f32 %v390, %v483
        %v485 = vpop.f32.mrb[0].mxu0
        %486 = vdwg.mxu0
        %487 = vmatprep.subr.mxu0 0.0
        %v488 = vand.u32 %v245, 4294901760
        %v489 = vsub.f32 %v245, %v488
        %490 = vmatpush1.msra.mxu0 %v489
        %491 = vmatprep.subr.mxu0 0.0
        %492 = vmatpush1.msra.mxu0 0.0
        %493 = vmatprep.subr.mxu0 0.0
        %494 = vmatpush1.msra.mxu0 0.0
        %495 = vmatprep.subr.mxu0 0.0
        %496 = vmatpush1.msra.mxu0 0.0
        %497 = vmatprep.subr.mxu0 0.0
        %498 = vmatpush1.msra.mxu0 0.0
        %499 = vmatprep.subr.mxu0 0.0
        %500 = vmatpush1.msra.mxu0 0.0
        %501 = vmatprep.subr.mxu0 0.0
        %502 = vmatpush1.msra.mxu0 0.0
        %503 = vmatprep.subr.mxu0 0.0
        %504 = vmatpush1.msra.mxu0 0.0
        %505 = vmatprep.subr.mxu0 0.0
        %506 = vmatpush1.msra.mxu0 0.0
        %507 = vmatprep.subr.mxu0 0.0
        %508 = vmatpush1.msra.mxu0 0.0
        %509 = vmatprep.subr.mxu0 0.0
        %510 = vmatpush1.msra.mxu0 0.0
        %511 = vmatprep.subr.mxu0 0.0
        %512 = vmatpush1.msra.mxu0 0.0
        %513 = vmatprep.subr.mxu0 0.0
        %514 = vmatpush1.msra.mxu0 0.0
        %515 = vmatprep.subr.mxu0 0.0
        %516 = vmatpush1.msra.mxu0 0.0
        %517 = vmatprep.subr.mxu0 0.0
        %518 = vmatpush1.msra.mxu0 0.0
        %519 = vmatprep.subr.mxu0 0.0
        %520 = vmatpush1.msra.mxu0 0.0
        %521 = vmatprep.subr.mxu0 0.0
        %522 = vmatpush1.msra.mxu0 0.0
        %523 = vmatprep.subr.mxu0 0.0
        %524 = vmatpush1.msra.mxu0 0.0
        %525 = vmatprep.subr.mxu0 0.0
        %526 = vmatpush1.msra.mxu0 0.0
        %527 = vmatprep.subr.mxu0 0.0
        %528 = vmatpush1.msra.mxu0 0.0
        %529 = vmatprep.subr.mxu0 0.0
        %530 = vmatpush1.msra.mxu0 0.0
        %531 = vmatprep.subr.mxu0 0.0
        %532 = vmatpush1.msra.mxu0 0.0
        %533 = vmatprep.subr.mxu0 0.0
        %534 = vmatpush1.msra.mxu0 0.0
        %535 = vmatprep.subr.mxu0 0.0
        %536 = vmatpush1.msra.mxu0 0.0
        %537 = vmatprep.subr.mxu0 0.0
        %538 = vmatpush1.msra.mxu0 0.0
        %539 = vmatprep.subr.mxu0 0.0
        %540 = vmatpush1.msra.mxu0 0.0
        %541 = vmatprep.subr.mxu0 0.0
        %542 = vmatpush1.msra.mxu0 0.0
        %543 = vmatprep.subr.mxu0 0.0
        %544 = vmatpush1.msra.mxu0 0.0
        %545 = vmatprep.subr.mxu0 0.0
        %546 = vmatpush1.msra.mxu0 0.0
        %547 = vmatprep.subr.mxu0 0.0
        %548 = vmatpush1.msra.mxu0 0.0
        %549 = vmatprep.subr.mxu0 0.0
        %550 = vmatpush1.msra.mxu0 0.0
        %551 = vmatprep.subr.mxu0 0.0
        %552 = vmatpush1.msra.mxu0 0.0
        %553 = vmatprep.mubr.f32.mxu0 0.0
        %v554 = vand.u32 %v276, 4294901760
        %v555 = vsub.f32 %v276, %v554
        %556 = vmatmul.mubr.f32.gmra.mrb[0].mxu0 %v555
        %v557 = vpop.f32.mrb[0].mxu0
        %v558 = vadd.f32 %v466, %v557
        %v559 = vpop.f32.mrb[0].mxu0
        %560 = vmatprep.mubr.f32.mxu0 0.0
        %v561 = vand.u32 %v279, 4294901760
        %v562 = vsub.f32 %v279, %v561
        %563 = vmatmul.mubr.f32.gmra.mrb[0].mxu0 %v562
        %v564 = vpop.f32.mrb[0].mxu0
        %v565 = vadd.f32 %v472, %v564
        %v566 = vpop.f32.mrb[0].mxu0
        %567 = vmatprep.mubr.f32.mxu0 0.0
        %v568 = vand.u32 %v282, 4294901760
        %v569 = vsub.f32 %v282, %v568
        %570 = vmatmul.mubr.f32.gmra.mrb[0].mxu0 %v569
        %v571 = vpop.f32.mrb[0].mxu0
        %v572 = vadd.f32 %v478, %v571
        %v573 = vpop.f32.mrb[0].mxu0
        %574 = vmatprep.mubr.f32.mxu0 0.0
        %v575 = vand.u32 %v285, 4294901760
        %v576 = vsub.f32 %v285, %v575
        %577 = vmatmul.mubr.f32.gmra.mrb[0].mxu0 %v576
        %v578 = vpop.f32.mrb[0].mxu0
        %v579 = vadd.f32 %v484, %v578
        %v580 = vpop.f32.mrb[0].mxu0
        %581 = vdwg.mxu0
        %582 = vmatprep.subr.mxu0 0.0
        %v583 = vand.u32 %v245, 4294901760
        %584 = vmatpush1.msra.mxu0 %v583
        %585 = vmatprep.subr.mxu0 0.0
        %586 = vmatpush1.msra.mxu0 0.0
        %587 = vmatprep.subr.mxu0 0.0
        %588 = vmatpush1.msra.mxu0 0.0
        %589 = vmatprep.subr.mxu0 0.0
        %590 = vmatpush1.msra.mxu0 0.0
        %591 = vmatprep.subr.mxu0 0.0
        %592 = vmatpush1.msra.mxu0 0.0
        %593 = vmatprep.subr.mxu0 0.0
        %594 = vmatpush1.msra.mxu0 0.0
        %595 = vmatprep.subr.mxu0 0.0
        %596 = vmatpush1.msra.mxu0 0.0
        %597 = vmatprep.subr.mxu0 0.0
        %598 = vmatpush1.msra.mxu0 0.0
        %599 = vmatprep.subr.mxu0 0.0
        %600 = vmatpush1.msra.mxu0 0.0
        %601 = vmatprep.subr.mxu0 0.0
        %602 = vmatpush1.msra.mxu0 0.0
        %603 = vmatprep.subr.mxu0 0.0
        %604 = vmatpush1.msra.mxu0 0.0
        %605 = vmatprep.subr.mxu0 0.0
        %606 = vmatpush1.msra.mxu0 0.0
        %607 = vmatprep.subr.mxu0 0.0
        %608 = vmatpush1.msra.mxu0 0.0
        %609 = vmatprep.subr.mxu0 0.0
        %610 = vmatpush1.msra.mxu0 0.0
        %611 = vmatprep.subr.mxu0 0.0
        %612 = vmatpush1.msra.mxu0 0.0
        %613 = vmatprep.subr.mxu0 0.0
        %614 = vmatpush1.msra.mxu0 0.0
        %615 = vmatprep.subr.mxu0 0.0
        %616 = vmatpush1.msra.mxu0 0.0
        %617 = vmatprep.subr.mxu0 0.0
        %618 = vmatpush1.msra.mxu0 0.0
        %619 = vmatprep.subr.mxu0 0.0
        %620 = vmatpush1.msra.mxu0 0.0
        %621 = vmatprep.subr.mxu0 0.0
        %622 = vmatpush1.msra.mxu0 0.0
        %623 = vmatprep.subr.mxu0 0.0
        %624 = vmatpush1.msra.mxu0 0.0
        %625 = vmatprep.subr.mxu0 0.0
        %626 = vmatpush1.msra.mxu0 0.0
        %627 = vmatprep.subr.mxu0 0.0
        %628 = vmatpush1.msra.mxu0 0.0
        %629 = vmatprep.subr.mxu0 0.0
        %630 = vmatpush1.msra.mxu0 0.0
        %631 = vmatprep.subr.mxu0 0.0
        %632 = vmatpush1.msra.mxu0 0.0
        %633 = vmatprep.subr.mxu0 0.0
        %634 = vmatpush1.msra.mxu0 0.0
        %635 = vmatprep.subr.mxu0 0.0
        %636 = vmatpush1.msra.mxu0 0.0
        %637 = vmatprep.subr.mxu0 0.0
        %638 = vmatpush1.msra.mxu0 0.0
        %639 = vmatprep.subr.mxu0 0.0
        %640 = vmatpush1.msra.mxu0 0.0
        %641 = vmatprep.subr.mxu0 0.0
        %642 = vmatpush1.msra.mxu0 0.0
        %643 = vmatprep.subr.mxu0 0.0
        %644 = vmatpush1.msra.mxu0 0.0
        %645 = vmatprep.subr.mxu0 0.0
        %646 = vmatpush1.msra.mxu0 0.0
        %647 = vmatprep.mubr.f32.mxu0 0.0
        %v648 = vand.u32 %v276, 4294901760
        %v649 = vsub.f32 %v276, %v648
        %v650 = vand.u32 %v649, 4294901760
        %651 = vmatmul.mubr.f32.gmra.mrb[0].mxu0 %v650
        %v652 = vpop.f32.mrb[0].mxu0
        %v653 = vadd.f32 %v558, %v652
        %v654 = vpop.f32.mrb[0].mxu0
        %655 = vmatprep.mubr.f32.mxu0 0.0
        %v656 = vand.u32 %v279, 4294901760
        %v657 = vsub.f32 %v279, %v656
        %v658 = vand.u32 %v657, 4294901760
        %659 = vmatmul.mubr.f32.gmra.mrb[0].mxu0 %v658
        %v660 = vpop.f32.mrb[0].mxu0
        %v661 = vadd.f32 %v565, %v660
        %v662 = vpop.f32.mrb[0].mxu0
        %663 = vmatprep.mubr.f32.mxu0 0.0
        %v664 = vand.u32 %v282, 4294901760
        %v665 = vsub.f32 %v282, %v664
        %v666 = vand.u32 %v665, 4294901760
        %667 = vmatmul.mubr.f32.gmra.mrb[0].mxu0 %v666
        %v668 = vpop.f32.mrb[0].mxu0
        %v669 = vadd.f32 %v572, %v668
        %v670 = vpop.f32.mrb[0].mxu0
        %671 = vmatprep.mubr.f32.mxu0 0.0
        %v672 = vand.u32 %v285, 4294901760
        %v673 = vsub.f32 %v285, %v672
        %v674 = vand.u32 %v673, 4294901760
        %675 = vmatmul.mubr.f32.gmra.mrb[0].mxu0 %v674
        %v676 = vpop.f32.mrb[0].mxu0
        %v677 = vadd.f32 %v579, %v676
        %v678 = vpop.f32.mrb[0].mxu0
        %679 = vdwg.mxu0
        %680 = vmatprep.subr.mxu0 0.0
        %v681 = vand.u32 %v245, 4294901760
        %v682 = vsub.f32 %v245, %v681
        %v683 = vand.u32 %v682, 4294901760
        %684 = vmatpush1.msra.mxu0 %v683
        %685 = vmatprep.subr.mxu0 0.0
        %686 = vmatpush1.msra.mxu0 0.0
        %687 = vmatprep.subr.mxu0 0.0
        %688 = vmatpush1.msra.mxu0 0.0
        %689 = vmatprep.subr.mxu0 0.0
        %690 = vmatpush1.msra.mxu0 0.0
        %691 = vmatprep.subr.mxu0 0.0
        %692 = vmatpush1.msra.mxu0 0.0
        %693 = vmatprep.subr.mxu0 0.0
        %694 = vmatpush1.msra.mxu0 0.0
        %695 = vmatprep.subr.mxu0 0.0
        %696 = vmatpush1.msra.mxu0 0.0
        %697 = vmatprep.subr.mxu0 0.0
        %698 = vmatpush1.msra.mxu0 0.0
        %699 = vmatprep.subr.mxu0 0.0
        %700 = vmatpush1.msra.mxu0 0.0
        %701 = vmatprep.subr.mxu0 0.0
        %702 = vmatpush1.msra.mxu0 0.0
        %703 = vmatprep.subr.mxu0 0.0
        %704 = vmatpush1.msra.mxu0 0.0
        %705 = vmatprep.subr.mxu0 0.0
        %706 = vmatpush1.msra.mxu0 0.0
        %707 = vmatprep.subr.mxu0 0.0
        %708 = vmatpush1.msra.mxu0 0.0
        %709 = vmatprep.subr.mxu0 0.0
        %710 = vmatpush1.msra.mxu0 0.0
        %711 = vmatprep.subr.mxu0 0.0
        %712 = vmatpush1.msra.mxu0 0.0
        %713 = vmatprep.subr.mxu0 0.0
        %714 = vmatpush1.msra.mxu0 0.0
        %715 = vmatprep.subr.mxu0 0.0
        %716 = vmatpush1.msra.mxu0 0.0
        %717 = vmatprep.subr.mxu0 0.0
        %718 = vmatpush1.msra.mxu0 0.0
        %719 = vmatprep.subr.mxu0 0.0
        %720 = vmatpush1.msra.mxu0 0.0
        %721 = vmatprep.subr.mxu0 0.0
        %722 = vmatpush1.msra.mxu0 0.0
        %723 = vmatprep.subr.mxu0 0.0
        %724 = vmatpush1.msra.mxu0 0.0
        %725 = vmatprep.subr.mxu0 0.0
        %726 = vmatpush1.msra.mxu0 0.0
        %727 = vmatprep.subr.mxu0 0.0
        %728 = vmatpush1.msra.mxu0 0.0
        %729 = vmatprep.subr.mxu0 0.0
        %730 = vmatpush1.msra.mxu0 0.0
        %731 = vmatprep.subr.mxu0 0.0
        %732 = vmatpush1.msra.mxu0 0.0
        %733 = vmatprep.subr.mxu0 0.0
        %734 = vmatpush1.msra.mxu0 0.0
        %735 = vmatprep.subr.mxu0 0.0
        %736 = vmatpush1.msra.mxu0 0.0
        %737 = vmatprep.subr.mxu0 0.0
        %738 = vmatpush1.msra.mxu0 0.0
        %739 = vmatprep.subr.mxu0 0.0
        %740 = vmatpush1.msra.mxu0 0.0
        %741 = vmatprep.subr.mxu0 0.0
        %742 = vmatpush1.msra.mxu0 0.0
        %743 = vmatprep.subr.mxu0 0.0
        %744 = vmatpush1.msra.mxu0 0.0
        %745 = vmatprep.subr.mxu0 0.0
        %746 = vmatpush1.msra.mxu0 0.0
        %747 = vmatprep.mubr.f32.mxu0 0.0
        %v748 = vand.u32 %v276, 4294901760
        %749 = vmatmul.mubr.f32.gmra.mrb[0].mxu0 %v748
        %v750 = vpop.f32.mrb[0].mxu0
        %v751 = vadd.f32 %v653, %v750
        %v752 = vpop.f32.mrb[0].mxu0
        %753 = vmatprep.mubr.f32.mxu0 0.0
        %v754 = vand.u32 %v279, 4294901760
        %755 = vmatmul.mubr.f32.gmra.mrb[0].mxu0 %v754
        %v756 = vpop.f32.mrb[0].mxu0
        %v757 = vadd.f32 %v661, %v756
        %v758 = vpop.f32.mrb[0].mxu0
        %759 = vmatprep.mubr.f32.mxu0 0.0
        %v760 = vand.u32 %v282, 4294901760
        %761 = vmatmul.mubr.f32.gmra.mrb[0].mxu0 %v760
        %v762 = vpop.f32.mrb[0].mxu0
        %v763 = vadd.f32 %v669, %v762
        %v764 = vpop.f32.mrb[0].mxu0
        %765 = vmatprep.mubr.f32.mxu0 0.0
        %v766 = vand.u32 %v285, 4294901760
        %767 = vmatmul.mubr.f32.gmra.mrb[0].mxu0 %v766
        %v768 = vpop.f32.mrb[0].mxu0
        %v769 = vadd.f32 %v677, %v768
        %v770 = vpop.f32.mrb[0].mxu0
        %771 = vdwg.mxu0
        %772 = vmatprep.subr.mxu0 0.0
        %v773 = vand.u32 %v245, 4294901760
        %774 = vmatpush1.msra.mxu0 %v773
        %775 = vmatprep.subr.mxu0 0.0
        %776 = vmatpush1.msra.mxu0 0.0
        %777 = vmatprep.subr.mxu0 0.0
        %778 = vmatpush1.msra.mxu0 0.0
        %779 = vmatprep.subr.mxu0 0.0
        %780 = vmatpush1.msra.mxu0 0.0
        %781 = vmatprep.subr.mxu0 0.0
        %782 = vmatpush1.msra.mxu0 0.0
        %783 = vmatprep.subr.mxu0 0.0
        %784 = vmatpush1.msra.mxu0 0.0
        %785 = vmatprep.subr.mxu0 0.0
        %786 = vmatpush1.msra.mxu0 0.0
        %787 = vmatprep.subr.mxu0 0.0
        %788 = vmatpush1.msra.mxu0 0.0
        %789 = vmatprep.subr.mxu0 0.0
        %790 = vmatpush1.msra.mxu0 0.0
        %791 = vmatprep.subr.mxu0 0.0
        %792 = vmatpush1.msra.mxu0 0.0
        %793 = vmatprep.subr.mxu0 0.0
        %794 = vmatpush1.msra.mxu0 0.0
        %795 = vmatprep.subr.mxu0 0.0
        %796 = vmatpush1.msra.mxu0 0.0
        %797 = vmatprep.subr.mxu0 0.0
        %798 = vmatpush1.msra.mxu0 0.0
        %799 = vmatprep.subr.mxu0 0.0
        %800 = vmatpush1.msra.mxu0 0.0
        %801 = vmatprep.subr.mxu0 0.0
        %802 = vmatpush1.msra.mxu0 0.0
        %803 = vmatprep.subr.mxu0 0.0
        %804 = vmatpush1.msra.mxu0 0.0
        %805 = vmatprep.subr.mxu0 0.0
        %806 = vmatpush1.msra.mxu0 0.0
        %807 = vmatprep.subr.mxu0 0.0
        %808 = vmatpush1.msra.mxu0 0.0
        %809 = vmatprep.subr.mxu0 0.0
        %810 = vmatpush1.msra.mxu0 0.0
        %811 = vmatprep.subr.mxu0 0.0
        %812 = vmatpush1.msra.mxu0 0.0
        %813 = vmatprep.subr.mxu0 0.0
        %814 = vmatpush1.msra.mxu0 0.0
        %815 = vmatprep.subr.mxu0 0.0
        %816 = vmatpush1.msra.mxu0 0.0
        %817 = vmatprep.subr.mxu0 0.0
        %818 = vmatpush1.msra.mxu0 0.0
        %819 = vmatprep.subr.mxu0 0.0
        %820 = vmatpush1.msra.mxu0 0.0
        %821 = vmatprep.subr.mxu0 0.0
        %822 = vmatpush1.msra.mxu0 0.0
        %823 = vmatprep.subr.mxu0 0.0
        %824 = vmatpush1.msra.mxu0 0.0
        %825 = vmatprep.subr.mxu0 0.0
        %826 = vmatpush1.msra.mxu0 0.0
        %827 = vmatprep.subr.mxu0 0.0
        %828 = vmatpush1.msra.mxu0 0.0
        %829 = vmatprep.subr.mxu0 0.0
        %830 = vmatpush1.msra.mxu0 0.0
        %831 = vmatprep.subr.mxu0 0.0
        %832 = vmatpush1.msra.mxu0 0.0
        %833 = vmatprep.subr.mxu0 0.0
        %834 = vmatpush1.msra.mxu0 0.0
        %835 = vmatprep.subr.mxu0 0.0
        %836 = vmatpush1.msra.mxu0 0.0
        %837 = vmatprep.mubr.f32.mxu0 0.0
        %v838 = vand.u32 %v276, 4294901760
        %839 = vmatmul.mubr.f32.gmra.mrb[0].mxu0 %v838
        %v840 = vpop.f32.mrb[0].mxu0
        %v841 = vadd.f32 %v751, %v840
        %v842 = vpop.f32.mrb[0].mxu0
        %843 = vmatprep.mubr.f32.mxu0 0.0
        %v844 = vand.u32 %v279, 4294901760
        %845 = vmatmul.mubr.f32.gmra.mrb[0].mxu0 %v844
        %v846 = vpop.f32.mrb[0].mxu0
        %v847 = vadd.f32 %v757, %v846
        %v848 = vpop.f32.mrb[0].mxu0
        %849 = vmatprep.mubr.f32.mxu0 0.0
        %v850 = vand.u32 %v282, 4294901760
        %851 = vmatmul.mubr.f32.gmra.mrb[0].mxu0 %v850
        %v852 = vpop.f32.mrb[0].mxu0
        %v853 = vadd.f32 %v763, %v852
        %v854 = vpop.f32.mrb[0].mxu0
        %855 = vmatprep.mubr.f32.mxu0 0.0
        %v856 = vand.u32 %v285, 4294901760
        %857 = vmatmul.mubr.f32.gmra.mrb[0].mxu0 %v856
        %v858 = vpop.f32.mrb[0].mxu0
        %v859 = vadd.f32 %v769, %v858
        %v860 = vpop.f32.mrb[0].mxu0
        %861 = vdwg.mxu0
        %v862 = vmul.f32 %v841, 0.5
        %v863 = vmul.f32 %v847, 0.5
        %v864 = vmul.f32 %v853, 0.5
        %v865 = vmul.f32 %v859, 0.5
        %v866 = vmul.f32 %v841, 0.70710677
        %v867 = vmul.f32 %v847, 0.70710677
        %v868 = vmul.f32 %v853, 0.70710677
        %v869 = vmul.f32 %v859, 0.70710677
        %v870 = verf.f32.pop %v866
        %v871 = verf.f32.pop %v867
        %v872 = verf.f32.pop %v868
        %v873 = verf.f32.pop %v869
        %v874 = vadd.f32 %v870, 1.0
        %v875 = vadd.f32 %v871, 1.0
        %v876 = vadd.f32 %v872, 1.0
        %v877 = vadd.f32 %v873, 1.0
        %v878 = vmul.f32 %v862, %v874
        %v879 = vmul.f32 %v863, %v875
        %v880 = vmul.f32 %v864, %v876
        %v881 = vmul.f32 %v865, %v877
        %v882 = vld [vmem:[%s3] sm:$0xf]
        %v883 = vld [vmem:[%s4] sm:$0xf]
        %885 = vset.pattern.permute.xlu0 0
        %886 = vperm.xlu0 %885, %v883
        %v887 = vpop.permute.xlu0 %886
        %vm889 = vcmask 261120
        %v891 = vsel %vm889, %v882, 0
        %893 = vmatprep.subr.mxu0 0.0
        %v894 = vand.u32 %v878, 4294901760
        %895 = vmatpush1.msra.mxu0 %v894
        %896 = vmatprep.subr.mxu0 0.0
        %v897 = vand.u32 %v879, 4294901760
        %898 = vmatpush1.msra.mxu0 %v897
        %899 = vmatprep.subr.mxu0 0.0
        %v900 = vand.u32 %v880, 4294901760
        %901 = vmatpush1.msra.mxu0 %v900
        %902 = vmatprep.subr.mxu0 0.0
        %v903 = vand.u32 %v881, 4294901760
        %904 = vmatpush1.msra.mxu0 %v903
        %905 = vmatprep.subr.mxu0 0.0
        %906 = vmatpush1.msra.mxu0 0.0
        %907 = vmatprep.subr.mxu0 0.0
        %908 = vmatpush1.msra.mxu0 0.0
        %909 = vmatprep.subr.mxu0 0.0
        %910 = vmatpush1.msra.mxu0 0.0
        %911 = vmatprep.subr.mxu0 0.0
        %912 = vmatpush1.msra.mxu0 0.0
        %913 = vmatprep.subr.mxu0 0.0
        %914 = vmatpush1.msra.mxu0 0.0
        %915 = vmatprep.subr.mxu0 0.0
        %916 = vmatpush1.msra.mxu0 0.0
        %917 = vmatprep.subr.mxu0 0.0
        %918 = vmatpush1.msra.mxu0 0.0
        %919 = vmatprep.subr.mxu0 0.0
        %920 = vmatpush1.msra.mxu0 0.0
        %921 = vmatprep.subr.mxu0 0.0
        %922 = vmatpush1.msra.mxu0 0.0
        %923 = vmatprep.subr.mxu0 0.0
        %924 = vmatpush1.msra.mxu0 0.0
        %925 = vmatprep.subr.mxu0 0.0
        %926 = vmatpush1.msra.mxu0 0.0
        %927 = vmatprep.subr.mxu0 0.0
        %928 = vmatpush1.msra.mxu0 0.0
        %929 = vmatprep.subr.mxu0 0.0
        %930 = vmatpush1.msra.mxu0 0.0
        %931 = vmatprep.subr.mxu0 0.0
        %932 = vmatpush1.msra.mxu0 0.0
        %933 = vmatprep.subr.mxu0 0.0
        %934 = vmatpush1.msra.mxu0 0.0
        %935 = vmatprep.subr.mxu0 0.0
        %936 = vmatpush1.msra.mxu0 0.0
        %937 = vmatprep.subr.mxu0 0.0
        %938 = vmatpush1.msra.mxu0 0.0
        %939 = vmatprep.subr.mxu0 0.0
        %940 = vmatpush1.msra.mxu0 0.0
        %941 = vmatprep.subr.mxu0 0.0
        %942 = vmatpush1.msra.mxu0 0.0
        %943 = vmatprep.subr.mxu0 0.0
        %944 = vmatpush1.msra.mxu0 0.0
        %945 = vmatprep.subr.mxu0 0.0
        %946 = vmatpush1.msra.mxu0 0.0
        %947 = vmatprep.subr.mxu0 0.0
        %948 = vmatpush1.msra.mxu0 0.0
        %949 = vmatprep.subr.mxu0 0.0
        %950 = vmatpush1.msra.mxu0 0.0
        %951 = vmatprep.subr.mxu0 0.0
        %952 = vmatpush1.msra.mxu0 0.0
        %953 = vmatprep.subr.mxu0 0.0
        %954 = vmatpush1.msra.mxu0 0.0
        %955 = vmatprep.subr.mxu0 0.0
        %956 = vmatpush1.msra.mxu0 0.0
        %957 = vmatprep.subr.mxu0 0.0
        %958 = vmatpush1.msra.mxu0 0.0
        %959 = vmatprep.subr.mxu0 0.0
        %960 = vmatpush1.msra.mxu0 0.0
        %961 = vmatprep.mubr.f32.mxu0 0.0
        %v962 = vand.u32 %v891, 4294901760
        %v963 = vsub.f32 %v891, %v962
        %v964 = vand.u32 %v963, 4294901760
        %v965 = vsub.f32 %v963, %v964
        %v966 = vand.u32 %v965, 4294901760
        %967 = vmatmul.mubr.f32.gmra.mrb[0].mxu0 %v966
        %v968 = vpop.f32.mrb[0].mxu0
        %v969 = vadd.f32 %v887, %v968
        %v970 = vpop.f32.mrb[0].mxu0
        %971 = vdwg.mxu0
        %972 = vmatprep.subr.mxu0 0.0
        %v973 = vand.u32 %v878, 4294901760
        %v974 = vsub.f32 %v878, %v973
        %v975 = vand.u32 %v974, 4294901760
        %v976 = vsub.f32 %v974, %v975
        %v977 = vand.u32 %v976, 4294901760
        %978 = vmatpush1.msra.mxu0 %v977
        %979 = vmatprep.subr.mxu0 0.0
        %v980 = vand.u32 %v879, 4294901760
        %v981 = vsub.f32 %v879, %v980
        %v982 = vand.u32 %v981, 4294901760
        %v983 = vsub.f32 %v981, %v982
        %v984 = vand.u32 %v983, 4294901760
        %985 = vmatpush1.msra.mxu0 %v984
        %986 = vmatprep.subr.mxu0 0.0
        %v987 = vand.u32 %v880, 4294901760
        %v988 = vsub.f32 %v880, %v987
        %v989 = vand.u32 %v988, 4294901760
        %v990 = vsub.f32 %v988, %v989
        %v991 = vand.u32 %v990, 4294901760
        %992 = vmatpush1.msra.mxu0 %v991
        %993 = vmatprep.subr.mxu0 0.0
        %v994 = vand.u32 %v881, 4294901760
        %v995 = vsub.f32 %v881, %v994
        %v996 = vand.u32 %v995, 4294901760
        %v997 = vsub.f32 %v995, %v996
        %v998 = vand.u32 %v997, 4294901760
        %999 = vmatpush1.msra.mxu0 %v998
        %1000 = vmatprep.subr.mxu0 0.0
        %1001 = vmatpush1.msra.mxu0 0.0
        %1002 = vmatprep.subr.mxu0 0.0
        %1003 = vmatpush1.msra.mxu0 0.0
        %1004 = vmatprep.subr.mxu0 0.0
        %1005 = vmatpush1.msra.mxu0 0.0
        %1006 = vmatprep.subr.mxu0 0.0
        %1007 = vmatpush1.msra.mxu0 0.0
        %1008 = vmatprep.subr.mxu0 0.0
        %1009 = vmatpush1.msra.mxu0 0.0
        %1010 = vmatprep.subr.mxu0 0.0
        %1011 = vmatpush1.msra.mxu0 0.0
        %1012 = vmatprep.subr.mxu0 0.0
        %1013 = vmatpush1.msra.mxu0 0.0
        %1014 = vmatprep.subr.mxu0 0.0
        %1015 = vmatpush1.msra.mxu0 0.0
        %1016 = vmatprep.subr.mxu0 0.0
        %1017 = vmatpush1.msra.mxu0 0.0
        %1018 = vmatprep.subr.mxu0 0.0
        %1019 = vmatpush1.msra.mxu0 0.0
        %1020 = vmatprep.subr.mxu0 0.0
        %1021 = vmatpush1.msra.mxu0 0.0
        %1022 = vmatprep.subr.mxu0 0.0
        %1023 = vmatpush1.msra.mxu0 0.0
        %1024 = vmatprep.subr.mxu0 0.0
        %1025 = vmatpush1.msra.mxu0 0.0
        %1026 = vmatprep.subr.mxu0 0.0
        %1027 = vmatpush1.msra.mxu0 0.0
        %1028 = vmatprep.subr.mxu0 0.0
        %1029 = vmatpush1.msra.mxu0 0.0
        %1030 = vmatprep.subr.mxu0 0.0
        %1031 = vmatpush1.msra.mxu0 0.0
        %1032 = vmatprep.subr.mxu0 0.0
        %1033 = vmatpush1.msra.mxu0 0.0
        %1034 = vmatprep.subr.mxu0 0.0
        %1035 = vmatpush1.msra.mxu0 0.0
        %1036 = vmatprep.subr.mxu0 0.0
        %1037 = vmatpush1.msra.mxu0 0.0
        %1038 = vmatprep.subr.mxu0 0.0
        %1039 = vmatpush1.msra.mxu0 0.0
        %1040 = vmatprep.subr.mxu0 0.0
        %1041 = vmatpush1.msra.mxu0 0.0
        %1042 = vmatprep.subr.mxu0 0.0
        %1043 = vmatpush1.msra.mxu0 0.0
        %1044 = vmatprep.subr.mxu0 0.0
        %1045 = vmatpush1.msra.mxu0 0.0
        %1046 = vmatprep.subr.mxu0 0.0
        %1047 = vmatpush1.msra.mxu0 0.0
        %1048 = vmatprep.subr.mxu0 0.0
        %1049 = vmatpush1.msra.mxu0 0.0
        %1050 = vmatprep.subr.mxu0 0.0
        %1051 = vmatpush1.msra.mxu0 0.0
        %1052 = vmatprep.subr.mxu0 0.0
        %1053 = vmatpush1.msra.mxu0 0.0
        %1054 = vmatprep.subr.mxu0 0.0
        %1055 = vmatpush1.msra.mxu0 0.0
        %1056 = vmatprep.mubr.f32.mxu0 0.0
        %v1057 = vand.u32 %v891, 4294901760
        %1058 = vmatmul.mubr.f32.gmra.mrb[0].mxu0 %v1057
        %v1059 = vpop.f32.mrb[0].mxu0
        %v1060 = vadd.f32 %v969, %v1059
        %v1061 = vpop.f32.mrb[0].mxu0
        %1062 = vdwg.mxu0
        %1063 = vmatprep.subr.mxu0 0.0
        %v1064 = vand.u32 %v878, 4294901760
        %v1065 = vsub.f32 %v878, %v1064
        %1066 = vmatpush1.msra.mxu0 %v1065
        %1067 = vmatprep.subr.mxu0 0.0
        %v1068 = vand.u32 %v879, 4294901760
        %v1069 = vsub.f32 %v879, %v1068
        %1070 = vmatpush1.msra.mxu0 %v1069
        %1071 = vmatprep.subr.mxu0 0.0
        %v1072 = vand.u32 %v880, 4294901760
        %v1073 = vsub.f32 %v880, %v1072
        %1074 = vmatpush1.msra.mxu0 %v1073
        %1075 = vmatprep.subr.mxu0 0.0
        %v1076 = vand.u32 %v881, 4294901760
        %v1077 = vsub.f32 %v881, %v1076
        %1078 = vmatpush1.msra.mxu0 %v1077
        %1079 = vmatprep.subr.mxu0 0.0
        %1080 = vmatpush1.msra.mxu0 0.0
        %1081 = vmatprep.subr.mxu0 0.0
        %1082 = vmatpush1.msra.mxu0 0.0
        %1083 = vmatprep.subr.mxu0 0.0
        %1084 = vmatpush1.msra.mxu0 0.0
        %1085 = vmatprep.subr.mxu0 0.0
        %1086 = vmatpush1.msra.mxu0 0.0
        %1087 = vmatprep.subr.mxu0 0.0
        %1088 = vmatpush1.msra.mxu0 0.0
        %1089 = vmatprep.subr.mxu0 0.0
        %1090 = vmatpush1.msra.mxu0 0.0
        %1091 = vmatprep.subr.mxu0 0.0
        %1092 = vmatpush1.msra.mxu0 0.0
        %1093 = vmatprep.subr.mxu0 0.0
        %1094 = vmatpush1.msra.mxu0 0.0
        %1095 = vmatprep.subr.mxu0 0.0
        %1096 = vmatpush1.msra.mxu0 0.0
        %1097 = vmatprep.subr.mxu0 0.0
        %1098 = vmatpush1.msra.mxu0 0.0
        %1099 = vmatprep.subr.mxu0 0.0
        %1100 = vmatpush1.msra.mxu0 0.0
        %1101 = vmatprep.subr.mxu0 0.0
        %1102 = vmatpush1.msra.mxu0 0.0
        %1103 = vmatprep.subr.mxu0 0.0
        %1104 = vmatpush1.msra.mxu0 0.0
        %1105 = vmatprep.subr.mxu0 0.0
        %1106 = vmatpush1.msra.mxu0 0.0
        %1107 = vmatprep.subr.mxu0 0.0
        %1108 = vmatpush1.msra.mxu0 0.0
        %1109 = vmatprep.subr.mxu0 0.0
        %1110 = vmatpush1.msra.mxu0 0.0
        %1111 = vmatprep.subr.mxu0 0.0
        %1112 = vmatpush1.msra.mxu0 0.0
        %1113 = vmatprep.subr.mxu0 0.0
        %1114 = vmatpush1.msra.mxu0 0.0
        %1115 = vmatprep.subr.mxu0 0.0
        %1116 = vmatpush1.msra.mxu0 0.0
        %1117 = vmatprep.subr.mxu0 0.0
        %1118 = vmatpush1.msra.mxu0 0.0
        %1119 = vmatprep.subr.mxu0 0.0
        %1120 = vmatpush1.msra.mxu0 0.0
        %1121 = vmatprep.subr.mxu0 0.0
        %1122 = vmatpush1.msra.mxu0 0.0
        %1123 = vmatprep.subr.mxu0 0.0
        %1124 = vmatpush1.msra.mxu0 0.0
        %1125 = vmatprep.subr.mxu0 0.0
        %1126 = vmatpush1.msra.mxu0 0.0
        %1127 = vmatprep.subr.mxu0 0.0
        %1128 = vmatpush1.msra.mxu0 0.0
        %1129 = vmatprep.subr.mxu0 0.0
        %1130 = vmatpush1.msra.mxu0 0.0
        %1131 = vmatprep.subr.mxu0 0.0
        %1132 = vmatpush1.msra.mxu0 0.0
        %1133 = vmatprep.subr.mxu0 0.0
        %1134 = vmatpush1.msra.mxu0 0.0
        %1135 = vmatprep.mubr.f32.mxu0 0.0
        %v1136 = vand.u32 %v891, 4294901760
        %v1137 = vsub.f32 %v891, %v1136
        %1138 = vmatmul.mubr.f32.gmra.mrb[0].mxu0 %v1137
        %v1139 = vpop.f32.mrb[0].mxu0
        %v1140 = vadd.f32 %v1060, %v1139
        %v1141 = vpop.f32.mrb[0].mxu0
        %1142 = vdwg.mxu0
        %1143 = vmatprep.subr.mxu0 0.0
        %v1144 = vand.u32 %v878, 4294901760
        %1145 = vmatpush1.msra.mxu0 %v1144
        %1146 = vmatprep.subr.mxu0 0.0
        %v1147 = vand.u32 %v879, 4294901760
        %1148 = vmatpush1.msra.mxu0 %v1147
        %1149 = vmatprep.subr.mxu0 0.0
        %v1150 = vand.u32 %v880, 4294901760
        %1151 = vmatpush1.msra.mxu0 %v1150
        %1152 = vmatprep.subr.mxu0 0.0
        %v1153 = vand.u32 %v881, 4294901760
        %1154 = vmatpush1.msra.mxu0 %v1153
        %1155 = vmatprep.subr.mxu0 0.0
        %1156 = vmatpush1.msra.mxu0 0.0
        %1157 = vmatprep.subr.mxu0 0.0
        %1158 = vmatpush1.msra.mxu0 0.0
        %1159 = vmatprep.subr.mxu0 0.0
        %1160 = vmatpush1.msra.mxu0 0.0
        %1161 = vmatprep.subr.mxu0 0.0
        %1162 = vmatpush1.msra.mxu0 0.0
        %1163 = vmatprep.subr.mxu0 0.0
        %1164 = vmatpush1.msra.mxu0 0.0
        %1165 = vmatprep.subr.mxu0 0.0
        %1166 = vmatpush1.msra.mxu0 0.0
        %1167 = vmatprep.subr.mxu0 0.0
        %1168 = vmatpush1.msra.mxu0 0.0
        %1169 = vmatprep.subr.mxu0 0.0
        %1170 = vmatpush1.msra.mxu0 0.0
        %1171 = vmatprep.subr.mxu0 0.0
        %1172 = vmatpush1.msra.mxu0 0.0
        %1173 = vmatprep.subr.mxu0 0.0
        %1174 = vmatpush1.msra.mxu0 0.0
        %1175 = vmatprep.subr.mxu0 0.0
        %1176 = vmatpush1.msra.mxu0 0.0
        %1177 = vmatprep.subr.mxu0 0.0
        %1178 = vmatpush1.msra.mxu0 0.0
        %1179 = vmatprep.subr.mxu0 0.0
        %1180 = vmatpush1.msra.mxu0 0.0
        %1181 = vmatprep.subr.mxu0 0.0
        %1182 = vmatpush1.msra.mxu0 0.0
        %1183 = vmatprep.subr.mxu0 0.0
        %1184 = vmatpush1.msra.mxu0 0.0
        %1185 = vmatprep.subr.mxu0 0.0
        %1186 = vmatpush1.msra.mxu0 0.0
        %1187 = vmatprep.subr.mxu0 0.0
        %1188 = vmatpush1.msra.mxu0 0.0
        %1189 = vmatprep.subr.mxu0 0.0
        %1190 = vmatpush1.msra.mxu0 0.0
        %1191 = vmatprep.subr.mxu0 0.0
        %1192 = vmatpush1.msra.mxu0 0.0
        %1193 = vmatprep.subr.mxu0 0.0
        %1194 = vmatpush1.msra.mxu0 0.0
        %1195 = vmatprep.subr.mxu0 0.0
        %1196 = vmatpush1.msra.mxu0 0.0
        %1197 = vmatprep.subr.mxu0 0.0
        %1198 = vmatpush1.msra.mxu0 0.0
        %1199 = vmatprep.subr.mxu0 0.0
        %1200 = vmatpush1.msra.mxu0 0.0
        %1201 = vmatprep.subr.mxu0 0.0
        %1202 = vmatpush1.msra.mxu0 0.0
        %1203 = vmatprep.subr.mxu0 0.0
        %1204 = vmatpush1.msra.mxu0 0.0
        %1205 = vmatprep.subr.mxu0 0.0
        %1206 = vmatpush1.msra.mxu0 0.0
        %1207 = vmatprep.subr.mxu0 0.0
        %1208 = vmatpush1.msra.mxu0 0.0
        %1209 = vmatprep.subr.mxu0 0.0
        %1210 = vmatpush1.msra.mxu0 0.0
        %1211 = vmatprep.mubr.f32.mxu0 0.0
        %v1212 = vand.u32 %v891, 4294901760
        %v1213 = vsub.f32 %v891, %v1212
        %v1214 = vand.u32 %v1213, 4294901760
        %1215 = vmatmul.mubr.f32.gmra.mrb[0].mxu0 %v1214
        %v1216 = vpop.f32.mrb[0].mxu0
        %v1217 = vadd.f32 %v1140, %v1216
        %v1218 = vpop.f32.mrb[0].mxu0
        %1219 = vdwg.mxu0
        %1220 = vmatprep.subr.mxu0 0.0
        %v1221 = vand.u32 %v878, 4294901760
        %v1222 = vsub.f32 %v878, %v1221
        %v1223 = vand.u32 %v1222, 4294901760
        %1224 = vmatpush1.msra.mxu0 %v1223
        %1225 = vmatprep.subr.mxu0 0.0
        %v1226 = vand.u32 %v879, 4294901760
        %v1227 = vsub.f32 %v879, %v1226
        %v1228 = vand.u32 %v1227, 4294901760
        %1229 = vmatpush1.msra.mxu0 %v1228
        %1230 = vmatprep.subr.mxu0 0.0
        %v1231 = vand.u32 %v880, 4294901760
        %v1232 = vsub.f32 %v880, %v1231
        %v1233 = vand.u32 %v1232, 4294901760
        %1234 = vmatpush1.msra.mxu0 %v1233
        %1235 = vmatprep.subr.mxu0 0.0
        %v1236 = vand.u32 %v881, 4294901760
        %v1237 = vsub.f32 %v881, %v1236
        %v1238 = vand.u32 %v1237, 4294901760
        %1239 = vmatpush1.msra.mxu0 %v1238
        %1240 = vmatprep.subr.mxu0 0.0
        %1241 = vmatpush1.msra.mxu0 0.0
        %1242 = vmatprep.subr.mxu0 0.0
        %1243 = vmatpush1.msra.mxu0 0.0
        %1244 = vmatprep.subr.mxu0 0.0
        %1245 = vmatpush1.msra.mxu0 0.0
        %1246 = vmatprep.subr.mxu0 0.0
        %1247 = vmatpush1.msra.mxu0 0.0
        %1248 = vmatprep.subr.mxu0 0.0
        %1249 = vmatpush1.msra.mxu0 0.0
        %1250 = vmatprep.subr.mxu0 0.0
        %1251 = vmatpush1.msra.mxu0 0.0
        %1252 = vmatprep.subr.mxu0 0.0
        %1253 = vmatpush1.msra.mxu0 0.0
        %1254 = vmatprep.subr.mxu0 0.0
        %1255 = vmatpush1.msra.mxu0 0.0
        %1256 = vmatprep.subr.mxu0 0.0
        %1257 = vmatpush1.msra.mxu0 0.0
        %1258 = vmatprep.subr.mxu0 0.0
        %1259 = vmatpush1.msra.mxu0 0.0
        %1260 = vmatprep.subr.mxu0 0.0
        %1261 = vmatpush1.msra.mxu0 0.0
        %1262 = vmatprep.subr.mxu0 0.0
        %1263 = vmatpush1.msra.mxu0 0.0
        %1264 = vmatprep.subr.mxu0 0.0
        %1265 = vmatpush1.msra.mxu0 0.0
        %1266 = vmatprep.subr.mxu0 0.0
        %1267 = vmatpush1.msra.mxu0 0.0
        %1268 = vmatprep.subr.mxu0 0.0
        %1269 = vmatpush1.msra.mxu0 0.0
        %1270 = vmatprep.subr.mxu0 0.0
        %1271 = vmatpush1.msra.mxu0 0.0
        %1272 = vmatprep.subr.mxu0 0.0
        %1273 = vmatpush1.msra.mxu0 0.0
        %1274 = vmatprep.subr.mxu0 0.0
        %1275 = vmatpush1.msra.mxu0 0.0
        %1276 = vmatprep.subr.mxu0 0.0
        %1277 = vmatpush1.msra.mxu0 0.0
        %1278 = vmatprep.subr.mxu0 0.0
        %1279 = vmatpush1.msra.mxu0 0.0
        %1280 = vmatprep.subr.mxu0 0.0
        %1281 = vmatpush1.msra.mxu0 0.0
        %1282 = vmatprep.subr.mxu0 0.0
        %1283 = vmatpush1.msra.mxu0 0.0
        %1284 = vmatprep.subr.mxu0 0.0
        %1285 = vmatpush1.msra.mxu0 0.0
        %1286 = vmatprep.subr.mxu0 0.0
        %1287 = vmatpush1.msra.mxu0 0.0
        %1288 = vmatprep.subr.mxu0 0.0
        %1289 = vmatpush1.msra.mxu0 0.0
        %1290 = vmatprep.subr.mxu0 0.0
        %1291 = vmatpush1.msra.mxu0 0.0
        %1292 = vmatprep.subr.mxu0 0.0
        %1293 = vmatpush1.msra.mxu0 0.0
        %1294 = vmatprep.subr.mxu0 0.0
        %1295 = vmatpush1.msra.mxu0 0.0
        %1296 = vmatprep.mubr.f32.mxu0 0.0
        %v1297 = vand.u32 %v891, 4294901760
        %1298 = vmatmul.mubr.f32.gmra.mrb[0].mxu0 %v1297
        %v1299 = vpop.f32.mrb[0].mxu0
        %v1300 = vadd.f32 %v1217, %v1299
        %v1301 = vpop.f32.mrb[0].mxu0
        %1302 = vdwg.mxu0
        %1303 = vmatprep.subr.mxu0 0.0
        %v1304 = vand.u32 %v878, 4294901760
        %1305 = vmatpush1.msra.mxu0 %v1304
        %1306 = vmatprep.subr.mxu0 0.0
        %v1307 = vand.u32 %v879, 4294901760
        %1308 = vmatpush1.msra.mxu0 %v1307
        %1309 = vmatprep.subr.mxu0 0.0
        %v1310 = vand.u32 %v880, 4294901760
        %1311 = vmatpush1.msra.mxu0 %v1310
        %1312 = vmatprep.subr.mxu0 0.0
        %v1313 = vand.u32 %v881, 4294901760
        %1314 = vmatpush1.msra.mxu0 %v1313
        %1315 = vmatprep.subr.mxu0 0.0
        %1316 = vmatpush1.msra.mxu0 0.0
        %1317 = vmatprep.subr.mxu0 0.0
        %1318 = vmatpush1.msra.mxu0 0.0
        %1319 = vmatprep.subr.mxu0 0.0
        %1320 = vmatpush1.msra.mxu0 0.0
        %1321 = vmatprep.subr.mxu0 0.0
        %1322 = vmatpush1.msra.mxu0 0.0
        %1323 = vmatprep.subr.mxu0 0.0
        %1324 = vmatpush1.msra.mxu0 0.0
        %1325 = vmatprep.subr.mxu0 0.0
        %1326 = vmatpush1.msra.mxu0 0.0
        %1327 = vmatprep.subr.mxu0 0.0
        %1328 = vmatpush1.msra.mxu0 0.0
        %1329 = vmatprep.subr.mxu0 0.0
        %1330 = vmatpush1.msra.mxu0 0.0
        %1331 = vmatprep.subr.mxu0 0.0
        %1332 = vmatpush1.msra.mxu0 0.0
        %1333 = vmatprep.subr.mxu0 0.0
        %1334 = vmatpush1.msra.mxu0 0.0
        %1335 = vmatprep.subr.mxu0 0.0
        %1336 = vmatpush1.msra.mxu0 0.0
        %1337 = vmatprep.subr.mxu0 0.0
        %1338 = vmatpush1.msra.mxu0 0.0
        %1339 = vmatprep.subr.mxu0 0.0
        %1340 = vmatpush1.msra.mxu0 0.0
        %1341 = vmatprep.subr.mxu0 0.0
        %1342 = vmatpush1.msra.mxu0 0.0
        %1343 = vmatprep.subr.mxu0 0.0
        %1344 = vmatpush1.msra.mxu0 0.0
        %1345 = vmatprep.subr.mxu0 0.0
        %1346 = vmatpush1.msra.mxu0 0.0
        %1347 = vmatprep.subr.mxu0 0.0
        %1348 = vmatpush1.msra.mxu0 0.0
        %1349 = vmatprep.subr.mxu0 0.0
        %1350 = vmatpush1.msra.mxu0 0.0
        %1351 = vmatprep.subr.mxu0 0.0
        %1352 = vmatpush1.msra.mxu0 0.0
        %1353 = vmatprep.subr.mxu0 0.0
        %1354 = vmatpush1.msra.mxu0 0.0
        %1355 = vmatprep.subr.mxu0 0.0
        %1356 = vmatpush1.msra.mxu0 0.0
        %1357 = vmatprep.subr.mxu0 0.0
        %1358 = vmatpush1.msra.mxu0 0.0
        %1359 = vmatprep.subr.mxu0 0.0
        %1360 = vmatpush1.msra.mxu0 0.0
        %1361 = vmatprep.subr.mxu0 0.0
        %1362 = vmatpush1.msra.mxu0 0.0
        %1363 = vmatprep.subr.mxu0 0.0
        %1364 = vmatpush1.msra.mxu0 0.0
        %1365 = vmatprep.subr.mxu0 0.0
        %1366 = vmatpush1.msra.mxu0 0.0
        %1367 = vmatprep.subr.mxu0 0.0
        %1368 = vmatpush1.msra.mxu0 0.0
        %1369 = vmatprep.subr.mxu0 0.0
        %1370 = vmatpush1.msra.mxu0 0.0
        %1371 = vmatprep.mubr.f32.mxu0 0.0
        %v1372 = vand.u32 %v891, 4294901760
        %1373 = vmatmul.mubr.f32.gmra.mrb[0].mxu0 %v1372
        %v1374 = vpop.f32.mrb[0].mxu0
        %v1375 = vadd.f32 %v1300, %v1374
        %v1376 = vpop.f32.mrb[0].mxu0
        %1377 = vdwg.mxu0
        %1378 = vst [vmem:[%s237] sm:$0xf] %v1375
        %s1379 = sand.u32 %s153, 1
        %s1380 = scalar_lea.sflag [#allocation3], %s1379
        %s1381 = sand.u32 %s153, 1
        %s1382 = smul.addr %s1381, 4
        %s1383 = scalar_lea.vmem [#allocation2], %s1382
        // Predicated region
        $region41: #{feedforward_aggre.1} parent=39 // pred_check
          %p1384 = pneg %p163
        $region42: #{feedforward_aggre.1} parent=39 // pred_check_branch
          %1386 = sbr.rel (%p1384) target = $region44
        $region43: #{feedforward_aggre.1} parent=39 // pred_region
          %s1388 = ssub.s32 64, 64
          %1389 = vsyncadd %s1380, %s1388
          %s1390 = sadd.s32 %s24, %s23
          %s1391 = smul.addr %s1390, 64
          %s1392 = scalar_lea.hbm %s5, %s1391
          %s1394 = sshll.u32 %s1383, 4
          %s1395 = int_to_ptr.vmem [resolvable:$true] %s1394
          %1397 = dma.vmem_to_hbm [thread:$0]  %s1395, 64, %s1392, %s1380
        $region44: #{feedforward_aggre.1} parent=39 // pred_fallthru
          _
      $region40: #{feedforward_aggre.1} parent=5 // pred_fallthru
        _
      %p1398 = scmp.le.s32.totalorder 2, %s14
      // Predicated region
      $region45: #{feedforward_aggre.1} parent=5 // pred_check
        %p1399 = pneg %p1398
      $region46: #{feedforward_aggre.1} parent=5 // pred_check_branch
        %1401 = sbr.rel (%p1399) target = $region48
      $region47: #{feedforward_aggre.1} parent=5 // pred_region
        %s1402 = ssub.s32 %s14, 2
        // Predicated region
        $region49: #{feedforward_aggre.1} parent=47 // pred_check
          %p1403 = pneg %p169
        $region50: #{feedforward_aggre.1} parent=47 // pred_check_branch
          %1405 = sbr.rel (%p1403) target = $region52
        $region51: #{feedforward_aggre.1} parent=47 // pred_region
          %s1406 = sand.u32 %s154, 1
          %s1407 = scalar_lea.sflag [#allocation3], %s1406
          %s1408 = sand.u32 %s154, 1
          %s1409 = smul.addr %s1408, 4
          %s1410 = scalar_lea.vmem [#allocation2], %s1409
          %1411 = dma.done %s1407, 64
        $region52: #{feedforward_aggre.1} parent=47 // pred_fallthru
          _
      $region48: #{feedforward_aggre.1} parent=5 // pred_fallthru
        _
    $region6: #{feedforward_aggre.1} parent=1 // loop_footer
      %s18 = sadd.s32 1, %s14
    $region7: #{feedforward_aggre.1} parent=1 // loop_footer_branch
      %13 = sbr.rel target = $region3
    $region8: #{feedforward_aggre.1} parent=1 // loop_exit
      _
    %1412 = vsyncpa [#allocation3], 1
    %s1413 = scalar_lea.sflag [#allocation3], 1
    %1414 = vsyncpa %s1413, 1

</llo_original>
